<compile_context>
chip_gen: v6e
topology: v6e:2x2x1
jax: 0.10.0
libtpu: 0.0.40
codegen_flags: <defaults>
</compile_context>

<pallas_src>
import functools

import jax
import jax.numpy as jnp
from jax.experimental import pallas as pl
from jax.experimental.pallas import tpu as pltpu

SMOOTH = 1e-6


def _dice_xent2_kernel(x_ref, t_ref, o_ref, acc_ref, *, h_total, th):
    k = pl.program_id(1)                       # position along the H (reduction) axis

    @pl.when(k == 0)
    def _init():
        acc_ref[...] = jnp.zeros_like(acc_ref)

    x = x_ref[...].astype(jnp.float32)         # (tile_nc, TH, W)
    t = t_ref[...].astype(jnp.float32)

    intersect = jnp.sum(x * t, axis=-1)              # (tile_nc, TH)
    denom = jnp.sum(x * x + t * t, axis=-1)          # fused: 2 XLU reductions, not 3

    dice = (2.0 * intersect + SMOOTH) / (denom + SMOOTH)     # (tile_nc, TH)

    if h_total % th != 0:
        # Last H tile carries padded (garbage) rows: drop them from the sum.
        row = k * th + jax.lax.broadcasted_iota(jnp.int32, dice.shape, 1)
        dice = jnp.where(row < h_total, dice, 0.0)

    acc_ref[...] += jnp.sum(dice, axis=-1, keepdims=True)    # (tile_nc, 1)

    @pl.when(k == pl.num_programs(1) - 1)
    def _finalize():
        o_ref[...] = acc_ref[...] * (1.0 / h_total)          # mean over the true H


def binary_dice_loss_xent2(inputs, target):
    """Pallas implementation of BinaryDiceLoss_xent2.forward(inputs, target)."""
    assert inputs.shape[2:] == target.shape[2:], "predict & target shape do not match"
    assert inputs.shape == target.shape, "kernel requires identical (N, C, H, W) shapes"
    N, C, H, W = target.shape
    NC = N * C

    x = inputs.reshape(NC, H, W)
    t = target.reshape(NC, H, W)

    # ---- tile sizing -------------------------------------------------------
    tile_nc = min(NC, 8)
    in_bytes_per_row = tile_nc * W * (x.dtype.itemsize + t.dtype.itemsize)
    if H % 8 == 0:
        # keep ~4 MiB of live input data per grid step (~8 MiB double-buffered)
        th = max(8, ((4 * 1024 * 1024) // in_bytes_per_row) // 8 * 8)
        th = min(th, H)
    else:
        th = H          # full-H block is always a legal block shape

    nc_tiles = pl.cdiv(NC, tile_nc)
    h_tiles = pl.cdiv(H, th)
    nc_pad = nc_tiles * tile_nc          # output padded to a whole number of blocks

    block_bytes = tile_nc * th * W * (x.dtype.itemsize + t.dtype.itemsize)
    vmem_limit = int(min(32 * 1024 * 1024, max(16 * 1024 * 1024, 4 * block_bytes)))

    kernel = functools.partial(_dice_xent2_kernel, h_total=H, th=th)

    out = pl.pallas_call(
        kernel,
        out_shape=jax.ShapeDtypeStruct((nc_pad, 1), jnp.float32),
        grid_spec=pltpu.PrefetchScalarGridSpec(
            num_scalar_prefetch=0,
            grid=(nc_tiles, h_tiles),
            in_specs=[
                pl.BlockSpec((tile_nc, th, W), lambda i, k: (i, k, 0)),
                pl.BlockSpec((tile_nc, th, W), lambda i, k: (i, k, 0)),
            ],
            out_specs=pl.BlockSpec((tile_nc, 1), lambda i, k: (i, 0)),
            scratch_shapes=[pltpu.VMEM((tile_nc, 1), jnp.float32)],
        ),
        compiler_params=pltpu.CompilerParams(
            dimension_semantics=("parallel", "arbitrary"),
            vmem_limit_bytes=vmem_limit,
        ),
    )(x, t)

    return out[:NC, 0].reshape(N, C)


def _reference(inputs, target):
    inter = jnp.sum(inputs * target, axis=-1)
    z = jnp.sum(inputs * inputs, axis=-1)
    y = jnp.sum(target * target, axis=-1)
    dice = (2.0 * inter + SMOOTH) / (z + y + SMOOTH)
    return jnp.mean(dice, axis=-1)


if __name__ == "__main__":
    key = jax.random.PRNGKey(0)
    k1, k2 = jax.random.split(key)

    N, C, H, W = 2, 4, 16, 16
    # "inputs" plays the role of a probability map, "target" a binary mask.
    inputs = jax.nn.sigmoid(jax.random.normal(k1, (N, C, H, W), dtype=jnp.float32))
    target = (jax.random.uniform(k2, (N, C, H, W)) > 0.5).astype(jnp.float32)

    out = binary_dice_loss_xent2(inputs, target)
    out = jax.block_until_ready(out)

    ref = _reference(inputs, target)
    assert out.shape == (N, C)
    assert jnp.allclose(out, ref, atol=1e-5, rtol=1e-5), (out, ref)

    print("KERNEL_OK")
</pallas_src>

<mosaic_0001>
module attributes {stable_mosaic.version = 11 : i64} {
  func.func @_dice_xent2_kernel(%arg0: i32, %arg1: i32, %arg2: memref<8x16x16xf32, #tpu.memory_space<vmem>>, %arg3: memref<8x16x16xf32, #tpu.memory_space<vmem>>, %arg4: memref<8x1xf32, #tpu.memory_space<vmem>>, %arg5: memref<8x1xf32, #tpu.memory_space<vmem>>) attributes {dimension_semantics = [#tpu.dimension_semantics<parallel>, #tpu.dimension_semantics<arbitrary>], iteration_bounds = array<i64: 1, 1>, scalar_prefetch = 0 : i64, scratch_operands = 1 : i64, tpu.core_type = #tpu.core_type<tc>, window_params = [{transform_indices = @transform_0, window_bounds = array<i64: 8, 16, 16>}, {transform_indices = @transform_1, window_bounds = array<i64: 8, 16, 16>}, {transform_indices = @transform_2, window_bounds = array<i64: 8, 1>}]} {
    %c0_i32 = arith.constant 0 : i32
    %0 = arith.cmpi eq, %arg1, %c0_i32 : i32
    %1 = arith.extui %0 : i1 to i32
    %c0_i32_0 = arith.constant 0 : i32
    %2 = arith.cmpi ne, %1, %c0_i32_0 : i32
    scf.if %2 {
      %cst_17 = arith.constant 0.000000e+00 : f32
      %26 = vector.broadcast %cst_17 : f32 to vector<8x1xf32>
      %c0_18 = arith.constant 0 : index
      %c0_19 = arith.constant 0 : index
      %27 = vector.load %arg5[%c0_18, %c0_19] : memref<8x1xf32, #tpu.memory_space<vmem>>, vector<8x1xf32>
      tpu.vector_store %arg5[%c0_18, %c0_19], %26 {strides = array<i32>} : memref<8x1xf32, #tpu.memory_space<vmem>>, vector<8x1xf32>,
    } else {
    }
    %c0 = arith.constant 0 : index
    %c0_1 = arith.constant 0 : index
    %c0_2 = arith.constant 0 : index
    %3 = vector.load %arg2[%c0, %c0_1, %c0_2] : memref<8x16x16xf32, #tpu.memory_space<vmem>>, vector<8x16x16xf32>
    %c0_3 = arith.constant 0 : index
    %c0_4 = arith.constant 0 : index
    %c0_5 = arith.constant 0 : index
    %4 = vector.load %arg3[%c0_3, %c0_4, %c0_5] : memref<8x16x16xf32, #tpu.memory_space<vmem>>, vector<8x16x16xf32>
    %5 = arith.mulf %3, %4 : vector<8x16x16xf32>
    %cst = arith.constant dense<0.000000e+00> : vector<8x16xf32>
    %6 = vector.multi_reduction <add>, %5, %cst [2] : vector<8x16x16xf32> to vector<8x16xf32>
    %7 = arith.mulf %3, %3 : vector<8x16x16xf32>
    %8 = arith.mulf %4, %4 : vector<8x16x16xf32>
    %9 = arith.addf %7, %8 : vector<8x16x16xf32>
    %cst_6 = arith.constant dense<0.000000e+00> : vector<8x16xf32>
    %10 = vector.multi_reduction <add>, %9, %cst_6 [2] : vector<8x16x16xf32> to vector<8x16xf32>
    %cst_7 = arith.constant 2.000000e+00 : f32
    %11 = vector.broadcast %cst_7 : f32 to vector<8x16xf32>
    %12 = arith.mulf %11, %6 : vector<8x16xf32>
    %cst_8 = arith.constant 9.99999997E-7 : f32
    %13 = vector.broadcast %cst_8 : f32 to vector<8x16xf32>
    %14 = arith.addf %12, %13 : vector<8x16xf32>
    %cst_9 = arith.constant 9.99999997E-7 : f32
    %15 = vector.broadcast %cst_9 : f32 to vector<8x16xf32>
    %16 = arith.addf %10, %15 : vector<8x16xf32>
    %17 = arith.divf %14, %16 : vector<8x16xf32>
    %c0_10 = arith.constant 0 : index
    %c0_11 = arith.constant 0 : index
    %18 = vector.load %arg5[%c0_10, %c0_11] : memref<8x1xf32, #tpu.memory_space<vmem>>, vector<8x1xf32>
    %cst_12 = arith.constant dense<0.000000e+00> : vector<8xf32>
    %19 = vector.multi_reduction <add>, %17, %cst_12 [1] : vector<8x16xf32> to vector<8xf32>
    %20 = vector.shape_cast %19 : vector<8xf32> to vector<8x1xf32>
    %21 = arith.addf %18, %20 : vector<8x1xf32>
    %c0_13 = arith.constant 0 : index
    %c0_14 = arith.constant 0 : index
    %22 = vector.load %arg5[%c0_13, %c0_14] : memref<8x1xf32, #tpu.memory_space<vmem>>, vector<8x1xf32>
    tpu.vector_store %arg5[%c0_13, %c0_14], %21 {strides = array<i32>} : memref<8x1xf32, #tpu.memory_space<vmem>>, vector<8x1xf32>,
    %c0_i32_15 = arith.constant 0 : i32
    %23 = arith.cmpi eq, %arg1, %c0_i32_15 : i32
    %24 = arith.extui %23 : i1 to i32
    %c0_i32_16 = arith.constant 0 : i32
    %25 = arith.cmpi ne, %24, %c0_i32_16 : i32
    scf.if %25 {
      %c0_17 = arith.constant 0 : index
      %c0_18 = arith.constant 0 : index
      %26 = vector.load %arg5[%c0_17, %c0_18] : memref<8x1xf32, #tpu.memory_space<vmem>>, vector<8x1xf32>
      %cst_19 = arith.constant 6.250000e-02 : f32
      %27 = vector.broadcast %cst_19 : f32 to vector<8x1xf32>
      %28 = arith.mulf %26, %27 : vector<8x1xf32>
      %c0_20 = arith.constant 0 : index
      %c0_21 = arith.constant 0 : index
      %29 = vector.load %arg4[%c0_20, %c0_21] : memref<8x1xf32, #tpu.memory_space<vmem>>, vector<8x1xf32>
      tpu.vector_store %arg4[%c0_20, %c0_21], %28 {strides = array<i32>} : memref<8x1xf32, #tpu.memory_space<vmem>>, vector<8x1xf32>,
    } else {
    }
    return
  }
  func.func @transform_0(%arg0: i32, %arg1: i32) -> (i32, i32, i32) {
    %c0_i32 = arith.constant 0 : i32
    %c0_i32_0 = arith.constant 0 : i32
    return %arg0, %arg1, %c0_i32 : i32, i32, i32
  }
  func.func @transform_1(%arg0: i32, %arg1: i32) -> (i32, i32, i32) {
    %c0_i32 = arith.constant 0 : i32
    %c0_i32_0 = arith.constant 0 : i32
    return %arg0, %arg1, %c0_i32 : i32, i32, i32
  }
  func.func @transform_2(%arg0: i32, %arg1: i32) -> (i32, i32) {
    %c0_i32 = arith.constant 0 : i32
    %c0_i32_0 = arith.constant 0 : i32
    return %arg0, %c0_i32 : i32, i32
  }
}

</mosaic_0001>

<llo_original>
// kernel: tpu_custom_call.1
$region0: #{tpu_custom_call.1}
  #allocation0 [shape = 'u32[]', space=smem, size = 0x4, offset = 0x4, fixed_abs, tag = 'smem constant byte address 0x4 - core index']
  #allocation1 [shape = 'u32[144,128]{1,0:T(1,128)}', space=vmem, size = 0x12000, scoped, tag = 'internal scratch']
  #allocation2 [shape = 'f32[8,1]{1,0:T(8,128)}', space=vmem, size = 0x1000, scoped, tag = 'scratch operand']
  %s0 = inlined_call_operand.hbm [shape: f32[8,16,16], index: 0, kind: input, shape index: {}]
  %s1 = inlined_call_operand.hbm [shape: f32[8,16,16], index: 1, kind: input, shape index: {}]
  %s2 = inlined_call_operand.vmem [shape: f32[8,1], index: 2, kind: output, shape index: {}]
  %s3 = sld [smem:[#allocation0]]
  $region34: #{tpu_custom_call.1} parent=0
    _
  %s5 = ssub.s32 1, %s3
  %s6 = scalar_select 0, %s5, %s3
  $region1: #{tpu_custom_call.1} parent=0
    #allocation3 [shape = 'u8[65536]{0}', space=vmem, size = 0x10000, scoped, tag = 'input window, operand 0, single buffered']
    #allocation4 [shape = 's32[1]{0}', space=sflag, size = 0x4, scoped, tag = 'scoped memory for tpu_custom_call.1']
    #allocation5 [shape = 'u8[65536]{0}', space=vmem, size = 0x10000, scoped, tag = 'input window, operand 1, single buffered']
    #allocation6 [shape = 's32[1]{0}', space=sflag, size = 0x4, scoped, tag = 'scoped memory for tpu_custom_call.1']
    %7 = vsyncpa [#allocation4], 0
    %8 = vsyncpa [#allocation6], 0
    // Predicated region
    $region2: #{tpu_custom_call.1} parent=1 // pred_check
      _
    $region3: #{tpu_custom_call.1} parent=1 // pred_check_branch
      %10 = sbr.rel (0) target = $region5
    $region4: #{tpu_custom_call.1} parent=1 // pred_region
      %s12 = ssub.s32 2048, 2048
      %13 = vsyncadd [#allocation4], %s12
      %s14 = sshll.u32 [#allocation3], 4
      %s15 = int_to_ptr.vmem [resolvable:$true] %s14
      %20 = dma.hbm_to_vmem [thread:$0]  %s0, 2048, %s15, [#allocation4], 128, 128, 8
    $region5: #{tpu_custom_call.1} parent=1 // pred_fallthru
      _
    // Predicated region
    $region6: #{tpu_custom_call.1} parent=1 // pred_check
      _
    $region7: #{tpu_custom_call.1} parent=1 // pred_check_branch
      %22 = sbr.rel (0) target = $region9
    $region8: #{tpu_custom_call.1} parent=1 // pred_region
      %s24 = ssub.s32 2048, 2048
      %25 = vsyncadd [#allocation6], %s24
      %s26 = sshll.u32 [#allocation5], 4
      %s27 = int_to_ptr.vmem [resolvable:$true] %s26
      %32 = dma.hbm_to_vmem [thread:$0]  %s1, 2048, %s27, [#allocation6], 128, 128, 8
    $region9: #{tpu_custom_call.1} parent=1 // pred_fallthru
      _
    // Predicated region
    $region10: #{tpu_custom_call.1} parent=1 // pred_check
      _
    $region11: #{tpu_custom_call.1} parent=1 // pred_check_branch
      %34 = sbr.rel (0) target = $region13
    $region12: #{tpu_custom_call.1} parent=1 // pred_region
      %35 = dma.done [#allocation4], 2048
    $region13: #{tpu_custom_call.1} parent=1 // pred_fallthru
      _
    // Predicated region
    $region14: #{tpu_custom_call.1} parent=1 // pred_check
      _
    $region15: #{tpu_custom_call.1} parent=1 // pred_check_branch
      %37 = sbr.rel (0) target = $region17
    $region16: #{tpu_custom_call.1} parent=1 // pred_region
      %38 = dma.done [#allocation6], 2048
    $region17: #{tpu_custom_call.1} parent=1 // pred_fallthru
      _
    %p39 = scmp.eq.s32.totalorder 0, 0
    // Predicated region
    $region18: #{tpu_custom_call.1} parent=1 // pred_check
      %p40 = pneg %p39
    $region19: #{tpu_custom_call.1} parent=1 // pred_check_branch
      %42 = sbr.rel (%p40) target = $region21
    $region20: #{tpu_custom_call.1} parent=1 // pred_region
      %vm43 = vcmask 7168
      %44 = vst.msk [vmem:[#allocation2] sm:$0xff] %vm43, 0.0
    $region21: #{tpu_custom_call.1} parent=1 // pred_fallthru
      _
    %v45 = vld [vmem:[#allocation3] sm:$0xff]
    %v46 = vld [vmem:[#allocation3 + $0x8] sm:$0xff]
    %v47 = vld [vmem:[#allocation3 + $0x10] sm:$0xff]
    %v48 = vld [vmem:[#allocation3 + $0x18] sm:$0xff]
    %v49 = vld [vmem:[#allocation3 + $0x20] sm:$0xff]
    %v50 = vld [vmem:[#allocation3 + $0x28] sm:$0xff]
    %v51 = vld [vmem:[#allocation3 + $0x30] sm:$0xff]
    %v52 = vld [vmem:[#allocation3 + $0x38] sm:$0xff]
    %v53 = vld [vmem:[#allocation3 + $0x40] sm:$0xff]
    %v54 = vld [vmem:[#allocation3 + $0x48] sm:$0xff]
    %v55 = vld [vmem:[#allocation3 + $0x50] sm:$0xff]
    %v56 = vld [vmem:[#allocation3 + $0x58] sm:$0xff]
    %v57 = vld [vmem:[#allocation3 + $0x60] sm:$0xff]
    %v58 = vld [vmem:[#allocation3 + $0x68] sm:$0xff]
    %v59 = vld [vmem:[#allocation3 + $0x70] sm:$0xff]
    %v60 = vld [vmem:[#allocation3 + $0x78] sm:$0xff]
    %v61 = vld [vmem:[#allocation5] sm:$0xff]
    %v62 = vld [vmem:[#allocation5 + $0x8] sm:$0xff]
    %v63 = vld [vmem:[#allocation5 + $0x10] sm:$0xff]
    %v64 = vld [vmem:[#allocation5 + $0x18] sm:$0xff]
    %v65 = vld [vmem:[#allocation5 + $0x20] sm:$0xff]
    %v66 = vld [vmem:[#allocation5 + $0x28] sm:$0xff]
    %v67 = vld [vmem:[#allocation5 + $0x30] sm:$0xff]
    %v68 = vld [vmem:[#allocation5 + $0x38] sm:$0xff]
    %v69 = vld [vmem:[#allocation5 + $0x40] sm:$0xff]
    %v70 = vld [vmem:[#allocation5 + $0x48] sm:$0xff]
    %v71 = vld [vmem:[#allocation5 + $0x50] sm:$0xff]
    %v72 = vld [vmem:[#allocation5 + $0x58] sm:$0xff]
    %v73 = vld [vmem:[#allocation5 + $0x60] sm:$0xff]
    %v74 = vld [vmem:[#allocation5 + $0x68] sm:$0xff]
    %v75 = vld [vmem:[#allocation5 + $0x70] sm:$0xff]
    %v76 = vld [vmem:[#allocation5 + $0x78] sm:$0xff]
    %v77 = vmul.f32 %v45, %v61
    %v78 = vmul.f32 %v46, %v62
    %v79 = vmul.f32 %v47, %v63
    %v80 = vmul.f32 %v48, %v64
    %v81 = vmul.f32 %v49, %v65
    %v82 = vmul.f32 %v50, %v66
    %v83 = vmul.f32 %v51, %v67
    %v84 = vmul.f32 %v52, %v68
    %v85 = vmul.f32 %v53, %v69
    %v86 = vmul.f32 %v54, %v70
    %v87 = vmul.f32 %v55, %v71
    %v88 = vmul.f32 %v56, %v72
    %v89 = vmul.f32 %v57, %v73
    %v90 = vmul.f32 %v58, %v74
    %v91 = vmul.f32 %v59, %v75
    %v92 = vmul.f32 %v60, %v76
    %vm93 = vcmask 130048
    %v94 = vsel %vm93, %v77, 0.0
    %95 = vadd.xlane.f32.xlu0 %v94
    %v96 = vpop.xlane.xlu0 %95
    %v97 = vsel %vm93, %v78, 0.0
    %98 = vadd.xlane.f32.xlu0 %v97
    %v99 = vpop.xlane.xlu0 %98
    %v100 = vsel %vm93, %v79, 0.0
    %101 = vadd.xlane.f32.xlu0 %v100
    %v102 = vpop.xlane.xlu0 %101
    %v103 = vsel %vm93, %v80, 0.0
    %104 = vadd.xlane.f32.xlu0 %v103
    %v105 = vpop.xlane.xlu0 %104
    %v106 = vsel %vm93, %v81, 0.0
    %107 = vadd.xlane.f32.xlu0 %v106
    %v108 = vpop.xlane.xlu0 %107
    %v109 = vsel %vm93, %v82, 0.0
    %110 = vadd.xlane.f32.xlu0 %v109
    %v111 = vpop.xlane.xlu0 %110
    %v112 = vsel %vm93, %v83, 0.0
    %113 = vadd.xlane.f32.xlu0 %v112
    %v114 = vpop.xlane.xlu0 %113
    %v115 = vsel %vm93, %v84, 0.0
    %116 = vadd.xlane.f32.xlu0 %v115
    %v117 = vpop.xlane.xlu0 %116
    %v118 = vsel %vm93, %v85, 0.0
    %119 = vadd.xlane.f32.xlu0 %v118
    %v120 = vpop.xlane.xlu0 %119
    %v121 = vsel %vm93, %v86, 0.0
    %122 = vadd.xlane.f32.xlu0 %v121
    %v123 = vpop.xlane.xlu0 %122
    %v124 = vsel %vm93, %v87, 0.0
    %125 = vadd.xlane.f32.xlu0 %v124
    %v126 = vpop.xlane.xlu0 %125
    %v127 = vsel %vm93, %v88, 0.0
    %128 = vadd.xlane.f32.xlu0 %v127
    %v129 = vpop.xlane.xlu0 %128
    %v130 = vsel %vm93, %v89, 0.0
    %131 = vadd.xlane.f32.xlu0 %v130
    %v132 = vpop.xlane.xlu0 %131
    %v133 = vsel %vm93, %v90, 0.0
    %134 = vadd.xlane.f32.xlu0 %v133
    %v135 = vpop.xlane.xlu0 %134
    %v136 = vsel %vm93, %v91, 0.0
    %137 = vadd.xlane.f32.xlu0 %v136
    %v138 = vpop.xlane.xlu0 %137
    %v139 = vsel %vm93, %v92, 0.0
    %140 = vadd.xlane.f32.xlu0 %v139
    %v141 = vpop.xlane.xlu0 %140
    %v142 = vmul.f32 %v45, %v45
    %v143 = vmul.f32 %v46, %v46
    %v144 = vmul.f32 %v47, %v47
    %v145 = vmul.f32 %v48, %v48
    %v146 = vmul.f32 %v49, %v49
    %v147 = vmul.f32 %v50, %v50
    %v148 = vmul.f32 %v51, %v51
    %v149 = vmul.f32 %v52, %v52
    %v150 = vmul.f32 %v53, %v53
    %v151 = vmul.f32 %v54, %v54
    %v152 = vmul.f32 %v55, %v55
    %v153 = vmul.f32 %v56, %v56
    %v154 = vmul.f32 %v57, %v57
    %v155 = vmul.f32 %v58, %v58
    %v156 = vmul.f32 %v59, %v59
    %v157 = vmul.f32 %v60, %v60
    %v158 = vmul.f32 %v61, %v61
    %v159 = vmul.f32 %v62, %v62
    %v160 = vmul.f32 %v63, %v63
    %v161 = vmul.f32 %v64, %v64
    %v162 = vmul.f32 %v65, %v65
    %v163 = vmul.f32 %v66, %v66
    %v164 = vmul.f32 %v67, %v67
    %v165 = vmul.f32 %v68, %v68
    %v166 = vmul.f32 %v69, %v69
    %v167 = vmul.f32 %v70, %v70
    %v168 = vmul.f32 %v71, %v71
    %v169 = vmul.f32 %v72, %v72
    %v170 = vmul.f32 %v73, %v73
    %v171 = vmul.f32 %v74, %v74
    %v172 = vmul.f32 %v75, %v75
    %v173 = vmul.f32 %v76, %v76
    %v174 = vadd.f32 %v142, %v158
    %v175 = vadd.f32 %v143, %v159
    %v176 = vadd.f32 %v144, %v160
    %v177 = vadd.f32 %v145, %v161
    %v178 = vadd.f32 %v146, %v162
    %v179 = vadd.f32 %v147, %v163
    %v180 = vadd.f32 %v148, %v164
    %v181 = vadd.f32 %v149, %v165
    %v182 = vadd.f32 %v150, %v166
    %v183 = vadd.f32 %v151, %v167
    %v184 = vadd.f32 %v152, %v168
    %v185 = vadd.f32 %v153, %v169
    %v186 = vadd.f32 %v154, %v170
    %v187 = vadd.f32 %v155, %v171
    %v188 = vadd.f32 %v156, %v172
    %v189 = vadd.f32 %v157, %v173
    %v190 = vsel %vm93, %v174, 0.0
    %191 = vadd.xlane.f32.xlu0 %v190
    %v192 = vpop.xlane.xlu0 %191
    %v193 = vsel %vm93, %v175, 0.0
    %194 = vadd.xlane.f32.xlu0 %v193
    %v195 = vpop.xlane.xlu0 %194
    %v196 = vsel %vm93, %v176, 0.0
    %197 = vadd.xlane.f32.xlu0 %v196
    %v198 = vpop.xlane.xlu0 %197
    %v199 = vsel %vm93, %v177, 0.0
    %200 = vadd.xlane.f32.xlu0 %v199
    %v201 = vpop.xlane.xlu0 %200
    %v202 = vsel %vm93, %v178, 0.0
    %203 = vadd.xlane.f32.xlu0 %v202
    %v204 = vpop.xlane.xlu0 %203
    %v205 = vsel %vm93, %v179, 0.0
    %206 = vadd.xlane.f32.xlu0 %v205
    %v207 = vpop.xlane.xlu0 %206
    %v208 = vsel %vm93, %v180, 0.0
    %209 = vadd.xlane.f32.xlu0 %v208
    %v210 = vpop.xlane.xlu0 %209
    %v211 = vsel %vm93, %v181, 0.0
    %212 = vadd.xlane.f32.xlu0 %v211
    %v213 = vpop.xlane.xlu0 %212
    %v214 = vsel %vm93, %v182, 0.0
    %215 = vadd.xlane.f32.xlu0 %v214
    %v216 = vpop.xlane.xlu0 %215
    %v217 = vsel %vm93, %v183, 0.0
    %218 = vadd.xlane.f32.xlu0 %v217
    %v219 = vpop.xlane.xlu0 %218
    %v220 = vsel %vm93, %v184, 0.0
    %221 = vadd.xlane.f32.xlu0 %v220
    %v222 = vpop.xlane.xlu0 %221
    %v223 = vsel %vm93, %v185, 0.0
    %224 = vadd.xlane.f32.xlu0 %v223
    %v225 = vpop.xlane.xlu0 %224
    %v226 = vsel %vm93, %v186, 0.0
    %227 = vadd.xlane.f32.xlu0 %v226
    %v228 = vpop.xlane.xlu0 %227
    %v229 = vsel %vm93, %v187, 0.0
    %230 = vadd.xlane.f32.xlu0 %v229
    %v231 = vpop.xlane.xlu0 %230
    %v232 = vsel %vm93, %v188, 0.0
    %233 = vadd.xlane.f32.xlu0 %v232
    %v234 = vpop.xlane.xlu0 %233
    %v235 = vsel %vm93, %v189, 0.0
    %236 = vadd.xlane.f32.xlu0 %v235
    %v237 = vpop.xlane.xlu0 %236
    %v238 = vmul.f32 %v96, 2.0
    %v239 = vmul.f32 %v99, 2.0
    %v240 = vmul.f32 %v102, 2.0
    %v241 = vmul.f32 %v105, 2.0
    %v242 = vmul.f32 %v108, 2.0
    %v243 = vmul.f32 %v111, 2.0
    %v244 = vmul.f32 %v114, 2.0
    %v245 = vmul.f32 %v117, 2.0
    %v246 = vmul.f32 %v120, 2.0
    %v247 = vmul.f32 %v123, 2.0
    %v248 = vmul.f32 %v126, 2.0
    %v249 = vmul.f32 %v129, 2.0
    %v250 = vmul.f32 %v132, 2.0
    %v251 = vmul.f32 %v135, 2.0
    %v252 = vmul.f32 %v138, 2.0
    %v253 = vmul.f32 %v141, 2.0
    %v254 = vadd.f32 %v238, 1e-06
    %v255 = vadd.f32 %v239, 1e-06
    %v256 = vadd.f32 %v240, 1e-06
    %v257 = vadd.f32 %v241, 1e-06
    %v258 = vadd.f32 %v242, 1e-06
    %v259 = vadd.f32 %v243, 1e-06
    %v260 = vadd.f32 %v244, 1e-06
    %v261 = vadd.f32 %v245, 1e-06
    %v262 = vadd.f32 %v246, 1e-06
    %v263 = vadd.f32 %v247, 1e-06
    %v264 = vadd.f32 %v248, 1e-06
    %v265 = vadd.f32 %v249, 1e-06
    %v266 = vadd.f32 %v250, 1e-06
    %v267 = vadd.f32 %v251, 1e-06
    %v268 = vadd.f32 %v252, 1e-06
    %v269 = vadd.f32 %v253, 1e-06
    %v270 = vadd.f32 %v192, 1e-06
    %v271 = vadd.f32 %v195, 1e-06
    %v272 = vadd.f32 %v198, 1e-06
    %v273 = vadd.f32 %v201, 1e-06
    %v274 = vadd.f32 %v204, 1e-06
    %v275 = vadd.f32 %v207, 1e-06
    %v276 = vadd.f32 %v210, 1e-06
    %v277 = vadd.f32 %v213, 1e-06
    %v278 = vadd.f32 %v216, 1e-06
    %v279 = vadd.f32 %v219, 1e-06
    %v280 = vadd.f32 %v222, 1e-06
    %v281 = vadd.f32 %v225, 1e-06
    %v282 = vadd.f32 %v228, 1e-06
    %v283 = vadd.f32 %v231, 1e-06
    %v284 = vadd.f32 %v234, 1e-06
    %v285 = vadd.f32 %v237, 1e-06
    %v286 = vrcp.pop %v270
    %v287 = vmul.f32 %v254, %v286
    %v288 = vrcp.pop %v271
    %v289 = vmul.f32 %v255, %v288
    %v290 = vrcp.pop %v272
    %v291 = vmul.f32 %v256, %v290
    %v292 = vrcp.pop %v273
    %v293 = vmul.f32 %v257, %v292
    %v294 = vrcp.pop %v274
    %v295 = vmul.f32 %v258, %v294
    %v296 = vrcp.pop %v275
    %v297 = vmul.f32 %v259, %v296
    %v298 = vrcp.pop %v276
    %v299 = vmul.f32 %v260, %v298
    %v300 = vrcp.pop %v277
    %v301 = vmul.f32 %v261, %v300
    %v302 = vrcp.pop %v278
    %v303 = vmul.f32 %v262, %v302
    %v304 = vrcp.pop %v279
    %v305 = vmul.f32 %v263, %v304
    %v306 = vrcp.pop %v280
    %v307 = vmul.f32 %v264, %v306
    %v308 = vrcp.pop %v281
    %v309 = vmul.f32 %v265, %v308
    %v310 = vrcp.pop %v282
    %v311 = vmul.f32 %v266, %v310
    %v312 = vrcp.pop %v283
    %v313 = vmul.f32 %v267, %v312
    %v314 = vrcp.pop %v284
    %v315 = vmul.f32 %v268, %v314
    %v316 = vrcp.pop %v285
    %v317 = vmul.f32 %v269, %v316
    %v318 = vld [vmem:[#allocation2] sm:$0xff]
    %v335 = vlaneseq
    %v336 = vand.u32 %v335, 127
    %v337 = vlaneseq
    %v338 = vshrl.u32 %v337, 7
    %v339 = vsub.s32 %v336, %v338
    %v340 = vrot.slane %v287, %v339
    %v341 = vadd.s32 %v336, 4294967288
    %v342 = vlaneseq
    %v343 = vshrl.u32 %v342, 7
    %v344 = vsub.s32 %v341, %v343
    %v345 = vrot.slane %v289, %v344
    %vm346 = vcmask 130112
    %v347 = vsel %vm346, %v345, %v340
    %v348 = vlaneseq
    %v349 = vshrl.u32 %v348, 7
    %v350 = vsub.s32 %v336, %v349
    %v351 = vrot.slane %v291, %v350
    %v352 = vlaneseq
    %v353 = vshrl.u32 %v352, 7
    %v354 = vsub.s32 %v341, %v353
    %v355 = vrot.slane %v293, %v354
    %v356 = vsel %vm346, %v355, %v351
    %v357 = vlaneseq
    %v358 = vshrl.u32 %v357, 7
    %v359 = vsub.s32 %v336, %v358
    %v360 = vrot.slane %v295, %v359
    %v361 = vlaneseq
    %v362 = vshrl.u32 %v361, 7
    %v363 = vsub.s32 %v341, %v362
    %v364 = vrot.slane %v297, %v363
    %v365 = vsel %vm346, %v364, %v360
    %v366 = vlaneseq
    %v367 = vshrl.u32 %v366, 7
    %v368 = vsub.s32 %v336, %v367
    %v369 = vrot.slane %v299, %v368
    %v370 = vlaneseq
    %v371 = vshrl.u32 %v370, 7
    %v372 = vsub.s32 %v341, %v371
    %v373 = vrot.slane %v301, %v372
    %v374 = vsel %vm346, %v373, %v369
    %v375 = vlaneseq
    %v376 = vshrl.u32 %v375, 7
    %v377 = vsub.s32 %v336, %v376
    %v378 = vrot.slane %v303, %v377
    %v379 = vlaneseq
    %v380 = vshrl.u32 %v379, 7
    %v381 = vsub.s32 %v341, %v380
    %v382 = vrot.slane %v305, %v381
    %v383 = vsel %vm346, %v382, %v378
    %v384 = vlaneseq
    %v385 = vshrl.u32 %v384, 7
    %v386 = vsub.s32 %v336, %v385
    %v387 = vrot.slane %v307, %v386
    %v388 = vlaneseq
    %v389 = vshrl.u32 %v388, 7
    %v390 = vsub.s32 %v341, %v389
    %v391 = vrot.slane %v309, %v390
    %v392 = vsel %vm346, %v391, %v387
    %v393 = vlaneseq
    %v394 = vshrl.u32 %v393, 7
    %v395 = vsub.s32 %v336, %v394
    %v396 = vrot.slane %v311, %v395
    %v397 = vlaneseq
    %v398 = vshrl.u32 %v397, 7
    %v399 = vsub.s32 %v341, %v398
    %v400 = vrot.slane %v313, %v399
    %v401 = vsel %vm346, %v400, %v396
    %v402 = vlaneseq
    %v403 = vshrl.u32 %v402, 7
    %v404 = vsub.s32 %v336, %v403
    %v405 = vrot.slane %v315, %v404
    %v406 = vlaneseq
    %v407 = vshrl.u32 %v406, 7
    %v408 = vsub.s32 %v341, %v407
    %v409 = vrot.slane %v317, %v408
    %v410 = vsel %vm346, %v409, %v405
    %vm411 = vcmask 1041409
    %v412 = vsel %vm411, %v356, %v347
    %vm413 = vcmask 1042434
    %v414 = vsel %vm413, %v365, %v412
    %vm415 = vcmask 1043459
    %v416 = vsel %vm415, %v374, %v414
    %vm417 = vcmask 1044484
    %v418 = vsel %vm417, %v383, %v416
    %vm419 = vcmask 1045509
    %v420 = vsel %vm419, %v392, %v418
    %vm421 = vcmask 1046534
    %v422 = vsel %vm421, %v401, %v420
    %vm423 = vcmask 1047559
    %v424 = vsel %vm423, %v410, %v422
    %v426 = vsel %vm93, %v424, 0.0
    %427 = vadd.xlane.f32.xlu0 %v426
    %v428 = vpop.xlane.xlu0 %427
    %v429 = vadd.f32 %v318, %v428
    %vm430 = vcmask 7168
    %431 = vst.msk [vmem:[#allocation2] sm:$0xff] %vm430, %v429
    // Predicated region
    $region22: #{tpu_custom_call.1} parent=1 // pred_check
      %p432 = pneg %p39
    $region23: #{tpu_custom_call.1} parent=1 // pred_check_branch
      %434 = sbr.rel (%p432) target = $region25
    $region24: #{tpu_custom_call.1} parent=1 // pred_region
      %v435 = vld [vmem:[#allocation2] sm:$0xff]
      %v436 = vmul.f32 %v435, 0.0625
      %437 = vst.msk [vmem:[%s2] sm:$0xff] %vm430, %v436
    $region25: #{tpu_custom_call.1} parent=1 // pred_fallthru
      _
    // Predicated region
    $region26: #{tpu_custom_call.1} parent=1 // pred_check
      _
    $region27: #{tpu_custom_call.1} parent=1 // pred_check_branch
      %439 = sbr.rel (0) target = $region29
    $region28: #{tpu_custom_call.1} parent=1 // pred_region
      _
    $region29: #{tpu_custom_call.1} parent=1 // pred_fallthru
      _
    // Predicated region
    $region30: #{tpu_custom_call.1} parent=1 // pred_check
      _
    $region31: #{tpu_custom_call.1} parent=1 // pred_check_branch
      %441 = sbr.rel (0) target = $region33
    $region32: #{tpu_custom_call.1} parent=1 // pred_region
      _
    $region33: #{tpu_custom_call.1} parent=1 // pred_fallthru
      _
    %442 = vsyncpa [#allocation4], 1
    %443 = vsyncpa [#allocation6], 1

</llo_original>
